<compile_context>
chip_gen: v7x
topology: tpu7x:2x2x1
jax: 0.10.0
libtpu: 0.0.40
codegen_flags: <defaults>
</compile_context>

<pallas_src>
import functools

import jax
import jax.numpy as jnp
from jax import lax
from jax.experimental import pallas as pl
from jax.experimental.pallas import tpu as pltpu


def _range_classifier_kernel(x_ref, w1_ref, b1_ref, w2t_ref, b2_ref, o_ref, *, chunk):
    # x_ref: (3, T) batch-on-lanes tile; o_ref: (1, T)
    w1 = w1_ref[...]      # (10, 3)   fc1.weight
    b1 = b1_ref[...]      # (10, 1)   fc1.bias (column)
    w2t = w2t_ref[...]    # (1, 10)   fc2.weight
    b2 = b2_ref[0, 0]     # scalar    fc2.bias (SMEM)

    n_chunks = x_ref.shape[1] // chunk  # static

    def body(c, carry):
        j = pl.multiple_of(c * chunk, chunk)
        x = x_ref[:, pl.ds(j, chunk)]                                     # (3, chunk)
        # fc1 on the MXU; result (10, chunk) stays in vregs.
        h = jnp.dot(w1, x, preferred_element_type=jnp.float32) + b1
        h = jnp.maximum(h, 0.0)                                           # ReLU (VPU)
        # fc2 on the (otherwise idle) MXU: (1,10) @ (10,chunk) -> (1,chunk)
        z = jnp.dot(w2t, h, preferred_element_type=jnp.float32) + b2
        # sigmoid -> EUP; lane-dense unmasked store into the output tile.
        o_ref[:, pl.ds(j, chunk)] = jax.nn.sigmoid(z).astype(o_ref.dtype)
        return carry

    lax.fori_loop(0, n_chunks, body, 0)


def range_classifier_fm(xt, w1, b1, w2t, b2, *, tile=65536, chunk=1024):
    """Feature-major entry point (no wrapper-side transpose / pad).

    xt:  (3, B) float32  (batch on the trailing axis)
    w1:  (10, 3)   == PyTorch fc1.weight (out, in)
    b1:  (10, 1)   == fc1.bias as a column
    w2t: (1, 10)   == fc2.weight (out, in)
    b2:  (1, 1)    == fc2.bias (scalar, lives in SMEM)
    returns (1, B) float32
    """
    F, B = xt.shape
    assert F == 3, "RangeClassifier expects 3 input features"
    assert tile % chunk == 0

    if B >= chunk:
        T = min(tile, pl.cdiv(B, chunk) * chunk)     # multiple of chunk
    else:
        T = max(128, pl.cdiv(B, 128) * 128)          # small batch: one lane-aligned tile
        chunk = T
    n_tiles = pl.cdiv(B, T)                          # ragged last block handled by Pallas

    kernel = functools.partial(_range_classifier_kernel, chunk=chunk)
    out = pl.pallas_call(
        kernel,
        out_shape=jax.ShapeDtypeStruct((1, B), jnp.float32),
        grid=(n_tiles,),
        in_specs=[
            pl.BlockSpec((3, T), lambda i: (0, i)),            # x tile, batch-on-lanes
            pl.BlockSpec((10, 3), lambda i: (0, 0)),           # w1: resident
            pl.BlockSpec((10, 1), lambda i: (0, 0)),           # b1: resident
            pl.BlockSpec((1, 10), lambda i: (0, 0)),           # w2^T: resident
            pl.BlockSpec(memory_space=pltpu.MemorySpace.SMEM), # b2 scalar in SMEM
        ],
        out_specs=pl.BlockSpec((1, T), lambda i: (0, i)),      # lane-dense stores
        compiler_params=pltpu.CompilerParams(
            dimension_semantics=("parallel",),   # shard batch tiles across TCs (v7x)
            vmem_limit_bytes=32 << 20,           # headroom for 65536-wide tiles on v5e
        ),
    )(xt, w1, b1, w2t, b2)
    return out


def range_classifier(x, w1, b1, w2t, b2, **kw):
    """PyTorch-layout convenience wrapper: x (B, 3) -> (B, 1).

    Prefer `range_classifier_fm` (feature-major) to avoid the extra XLA
    transpose pass over x when the producer can emit (3, B) directly.
    """
    B = x.shape[0]
    out = range_classifier_fm(x.T, w1, b1, w2t, b2, **kw)   # (1, B)
    return out.reshape(B, 1)                                # cheap: leading dim is 1


def init_params(key):
    """Deterministic init mimicking PyTorch nn.Linear defaults
    (uniform(-1/sqrt(fan_in), 1/sqrt(fan_in)) for weight and bias)."""
    k1, k2, k3, k4 = jax.random.split(key, 4)
    bound1 = 1.0 / jnp.sqrt(3.0)
    bound2 = 1.0 / jnp.sqrt(10.0)
    w1 = jax.random.uniform(k1, (10, 3), jnp.float32, -bound1, bound1)   # fc1.weight
    b1 = jax.random.uniform(k2, (10, 1), jnp.float32, -bound1, bound1)   # fc1.bias (col)
    w2t = jax.random.uniform(k3, (1, 10), jnp.float32, -bound2, bound2)  # fc2.weight
    b2 = jax.random.uniform(k4, (1, 1), jnp.float32, -bound2, bound2)    # fc2.bias
    return w1, b1, w2t, b2


def reference(x, w1, b1, w2t, b2):
    h = jnp.maximum(x @ w1.T + b1.T, 0.0)      # (B, 10)
    return jax.nn.sigmoid(h @ w2t.T + b2)      # (B, 1)


if __name__ == "__main__":
    key = jax.random.PRNGKey(0)
    kx, kp = jax.random.split(key)
    w1, b1, w2t, b2 = init_params(kp)

    # Small PyTorch-layout batch.
    B = 8
    x = jax.random.normal(kx, (B, 3), jnp.float32)
    out = jax.block_until_ready(range_classifier(x, w1, b1, w2t, b2))
    ref = reference(x, w1, b1, w2t, b2)
    assert out.shape == (B, 1)
    assert jnp.allclose(out, ref, atol=1e-5, rtol=1e-5)

    # Feature-major path with a ragged multi-tile grid (exercises partial blocks).
    B2 = 300
    x2 = jax.random.normal(kx, (3, B2), jnp.float32)
    out2 = jax.block_until_ready(
        range_classifier_fm(x2, w1, b1, w2t, b2, tile=256, chunk=128)
    )
    ref2 = reference(x2.T, w1, b1, w2t, b2).T   # (1, B2)
    assert out2.shape == (1, B2)
    assert jnp.allclose(out2, ref2, atol=1e-5, rtol=1e-5)

    print("KERNEL_OK")
</pallas_src>

<mosaic_0001>
module attributes {stable_mosaic.version = 11 : i64} {
  func.func @_range_classifier_kernel(%arg0: i32, %arg1: memref<3x128xf32, #tpu.memory_space<vmem>>, %arg2: memref<10x3xf32, #tpu.memory_space<vmem>>, %arg3: memref<10x1xf32, #tpu.memory_space<vmem>>, %arg4: memref<1x10xf32, #tpu.memory_space<vmem>>, %arg5: memref<1x1xf32, #tpu.memory_space<smem>>, %arg6: memref<1x128xf32, #tpu.memory_space<vmem>>) attributes {dimension_semantics = [#tpu.dimension_semantics<parallel>], iteration_bounds = array<i64: 1>, scalar_prefetch = 0 : i64, scratch_operands = 0 : i64, tpu.core_type = #tpu.core_type<tc>, window_params = [{transform_indices = @transform_0, window_bounds = array<i64: 3, 128>}, {pipeline_mode = #tpu.pipeline_mode<synchronous>, transform_indices = @transform_1, window_bounds = array<i64: 10, 3>}, {pipeline_mode = #tpu.pipeline_mode<synchronous>, transform_indices = @transform_2, window_bounds = array<i64: 10, 1>}, {pipeline_mode = #tpu.pipeline_mode<synchronous>, transform_indices = @transform_3, window_bounds = array<i64: 1, 10>}, {transform_indices = @transform_4, window_bounds = array<i64: 1, 1>}, {transform_indices = @transform_5, window_bounds = array<i64: 1, 128>}]} {
    %c0 = arith.constant 0 : index
    %c0_0 = arith.constant 0 : index
    %0 = vector.load %arg2[%c0, %c0_0] : memref<10x3xf32, #tpu.memory_space<vmem>>, vector<10x3xf32>
    %c0_1 = arith.constant 0 : index
    %c0_2 = arith.constant 0 : index
    %1 = vector.load %arg3[%c0_1, %c0_2] : memref<10x1xf32, #tpu.memory_space<vmem>>, vector<10x1xf32>
    %c0_3 = arith.constant 0 : index
    %c0_4 = arith.constant 0 : index
    %2 = vector.load %arg4[%c0_3, %c0_4] : memref<1x10xf32, #tpu.memory_space<vmem>>, vector<1x10xf32>
    %c0_5 = arith.constant 0 : index
    %c0_6 = arith.constant 0 : index
    %3 = memref.load %arg5[%c0_5, %c0_6] : memref<1x1xf32, #tpu.memory_space<smem>>
    %c0_i32 = arith.constant 0 : i32
    %c128_i32 = arith.constant 128 : i32
    %4 = arith.muli %c0_i32, %c128_i32 : i32
    %5 = tpu.assume_multiple %4, 128 : i32
    %c0_7 = arith.constant 0 : index
    %6 = arith.index_cast %5 : i32 to index
    %7 = vector.load %arg1[%c0_7, %6] : memref<3x128xf32, #tpu.memory_space<vmem>>, vector<3x128xf32>
    %cst = arith.constant dense<0.000000e+00> : vector<10x128xf32>
    %8 = tpu.matmul %0, %7, %cst {dimension_numbers = #tpu.dot_dimension_numbers<[1], [0], [0], [1], [0, 0, 1, 1], [], []>} : vector<10x3xf32>, vector<3x128xf32>, vector<10x128xf32> -> vector<10x128xf32>
    %9 = vector.broadcast %1 : vector<10x1xf32> to vector<10x128xf32>
    %10 = arith.addf %8, %9 : vector<10x128xf32>
    %cst_8 = arith.constant 0.000000e+00 : f32
    %11 = vector.broadcast %cst_8 : f32 to vector<10x128xf32>
    %12 = arith.maximumf %10, %11 : vector<10x128xf32>
    %cst_9 = arith.constant dense<0.000000e+00> : vector<1x128xf32>
    %13 = tpu.matmul %2, %12, %cst_9 {dimension_numbers = #tpu.dot_dimension_numbers<[1], [0], [0], [1], [0, 0, 1, 1], [], []>} : vector<1x10xf32>, vector<10x128xf32>, vector<1x128xf32> -> vector<1x128xf32>
    %14 = vector.broadcast %3 : f32 to vector<1x128xf32>
    %15 = arith.addf %13, %14 : vector<1x128xf32>
    %16 = arith.negf %15 : vector<1x128xf32>
    %17 = math.exp %16 : vector<1x128xf32>
    %cst_10 = arith.constant 1.000000e+00 : f32
    %18 = vector.broadcast %cst_10 : f32 to vector<1x128xf32>
    %19 = arith.addf %18, %17 : vector<1x128xf32>
    %20 = arith.divf %18, %19 : vector<1x128xf32>
    %c0_11 = arith.constant 0 : index
    %21 = arith.index_cast %5 : i32 to index
    %22 = vector.load %arg6[%c0_11, %21] : memref<1x128xf32, #tpu.memory_space<vmem>>, vector<1x128xf32>
    tpu.vector_store %arg6[%c0_11, %21], %20 {strides = array<i32>} : memref<1x128xf32, #tpu.memory_space<vmem>>, vector<1x128xf32>,
    %c1_i32 = arith.constant 1 : i32
    return
  }
  func.func @transform_0(%arg0: i32) -> (i32, i32) {
    %c0_i32 = arith.constant 0 : i32
    %c0_i32_0 = arith.constant 0 : i32
    return %c0_i32, %arg0 : i32, i32
  }
  func.func @transform_1(%arg0: i32) -> (i32, i32) {
    %c0_i32 = arith.constant 0 : i32
    %c0_i32_0 = arith.constant 0 : i32
    %c0_i32_1 = arith.constant 0 : i32
    return %c0_i32, %c0_i32_0 : i32, i32
  }
  func.func @transform_2(%arg0: i32) -> (i32, i32) {
    %c0_i32 = arith.constant 0 : i32
    %c0_i32_0 = arith.constant 0 : i32
    %c0_i32_1 = arith.constant 0 : i32
    return %c0_i32, %c0_i32_0 : i32, i32
  }
  func.func @transform_3(%arg0: i32) -> (i32, i32) {
    %c0_i32 = arith.constant 0 : i32
    %c0_i32_0 = arith.constant 0 : i32
    %c0_i32_1 = arith.constant 0 : i32
    return %c0_i32, %c0_i32_0 : i32, i32
  }
  func.func @transform_4(%arg0: i32) -> (i32, i32) {
    %c0_i32 = arith.constant 0 : i32
    %c0_i32_0 = arith.constant 0 : i32
    %c0_i32_1 = arith.constant 0 : i32
    return %c0_i32, %c0_i32_0 : i32, i32
  }
  func.func @transform_5(%arg0: i32) -> (i32, i32) {
    %c0_i32 = arith.constant 0 : i32
    %c0_i32_0 = arith.constant 0 : i32
    return %c0_i32, %arg0 : i32, i32
  }
}

</mosaic_0001>

<llo_original>
// kernel: tpu_custom_call.1
$region0: #{tpu_custom_call.1}
  #allocation0 [shape = 'u32[]', space=smem, size = 0x4, offset = 0x4, fixed_abs, tag = 'smem constant byte address 0x4 - core index']
  #allocation1 [shape = 'u32[144,128]{1,0:T(1,128)}', space=vmem, size = 0x12000, scoped, tag = 'internal scratch']
  #allocation2 [shape = 'f32[1,1]{1,0:T(1,128)S(6)}', space=smem, size = 0x200, scoped, tag = 'scoped memory for tpu_custom_call.1']
  %s0 = inlined_call_operand.vmem [shape: f32[3,8], index: 0, kind: input, shape index: {}]
  %s1 = inlined_call_operand.vmem [shape: f32[10,3], index: 1, kind: input, shape index: {}]
  %s2 = inlined_call_operand.vmem [shape: f32[10,1], index: 2, kind: input, shape index: {}]
  %s3 = inlined_call_operand.vmem [shape: f32[1,10], index: 3, kind: input, shape index: {}]
  %s4 = inlined_call_operand.<no memory space> [shape: f32[1,1], index: 4, kind: input, shape index: {}]
  %s5 = inlined_call_operand.hbm [shape: f32[1,8], index: 5, kind: output, shape index: {}]
  %s6 = sld [smem:[#allocation0]]
  $region30: #{tpu_custom_call.1} parent=0
    _
  %s8 = ssub.s32 1, %s6
  %s9 = scalar_select 0, %s8, %s6
  %10 = sst [smem:[#allocation2]] %s4
  $region1: #{tpu_custom_call.1} parent=0
    #allocation3 [shape = 'u8[512]{0}', space=vmem, size = 0x400, scoped, tag = 'output window, operand 0, single buffered']
    #allocation4 [shape = 's32[1]{0}', space=sflag, size = 0x4, scoped, tag = 'scoped memory for tpu_custom_call.1']
    %11 = vsyncpa [#allocation4], 0
    // Predicated region
    $region2: #{tpu_custom_call.1} parent=1 // pred_check
      _
    $region3: #{tpu_custom_call.1} parent=1 // pred_check_branch
      %13 = sbr.rel (0) target = $region5
    $region4: #{tpu_custom_call.1} parent=1 // pred_region
      _
    $region5: #{tpu_custom_call.1} parent=1 // pred_fallthru
      _
    // Predicated region
    $region6: #{tpu_custom_call.1} parent=1 // pred_check
      _
    $region7: #{tpu_custom_call.1} parent=1 // pred_check_branch
      %15 = sbr.rel (0) target = $region9
    $region8: #{tpu_custom_call.1} parent=1 // pred_region
      _
    $region9: #{tpu_custom_call.1} parent=1 // pred_fallthru
      _
    // Predicated region
    $region10: #{tpu_custom_call.1} parent=1 // pred_check
      _
    $region11: #{tpu_custom_call.1} parent=1 // pred_check_branch
      %17 = sbr.rel (0) target = $region13
    $region12: #{tpu_custom_call.1} parent=1 // pred_region
      _
    $region13: #{tpu_custom_call.1} parent=1 // pred_fallthru
      _
    // Predicated region
    $region14: #{tpu_custom_call.1} parent=1 // pred_check
      _
    $region15: #{tpu_custom_call.1} parent=1 // pred_check_branch
      %19 = sbr.rel (0) target = $region17
    $region16: #{tpu_custom_call.1} parent=1 // pred_region
      _
    $region17: #{tpu_custom_call.1} parent=1 // pred_fallthru
      _
    // Predicated region
    $region18: #{tpu_custom_call.1} parent=1 // pred_check
      _
    $region19: #{tpu_custom_call.1} parent=1 // pred_check_branch
      %21 = sbr.rel (0) target = $region21
    $region20: #{tpu_custom_call.1} parent=1 // pred_region
      _
    $region21: #{tpu_custom_call.1} parent=1 // pred_fallthru
      _
    %v22 = vld [vmem:[%s1] sm:$0xff]
    %v23 = vld [vmem:[%s1 + $0x8] sm:$0x3]
    %v24 = vld [vmem:[%s2] sm:$0xff]
    %v25 = vld [vmem:[%s2 + $0x8] sm:$0x3]
    %v26 = vld [vmem:[%s3] sm:$0x1]
    %s27 = sld [smem:[#allocation2]]
    %v28 = vld [vmem:[%s0] sm:$0x7]
    %30 = vset.pattern.permute.xlu0 0
    %31 = vperm.xlu0 %30, %v24
    %v32 = vpop.permute.xlu0 %31
    %35 = vset.pattern.permute.xlu0 0
    %36 = vperm.xlu0 %35, %v25
    %v37 = vpop.permute.xlu0 %36
    %vm39 = vcmask 23552
    %v41 = vsel %vm39, %v22, 0
    %v44 = vsel %vm39, %v23, 0
    %vm46 = vcmask 1042432
    %v48 = vsel %vm46, %v28, 0
    %50 = vmatprep.subr.mxu0 0.0
    %51 = vmatpush1.msra.mxu0 %v48
    %52 = vmatprep.subr.mxu0 0.0
    %53 = vmatpush1.msra.mxu0 0.0
    %54 = vmatprep.subr.mxu0 0.0
    %55 = vmatpush1.msra.mxu0 0.0
    %56 = vmatprep.subr.mxu0 0.0
    %57 = vmatpush1.msra.mxu0 0.0
    %58 = vmatprep.subr.mxu0 0.0
    %59 = vmatpush1.msra.mxu0 0.0
    %60 = vmatprep.subr.mxu0 0.0
    %61 = vmatpush1.msra.mxu0 0.0
    %62 = vmatprep.subr.mxu0 0.0
    %63 = vmatpush1.msra.mxu0 0.0
    %64 = vmatprep.subr.mxu0 0.0
    %65 = vmatpush1.msra.mxu0 0.0
    %66 = vmatprep.subr.mxu0 0.0
    %67 = vmatpush1.msra.mxu0 0.0
    %68 = vmatprep.subr.mxu0 0.0
    %69 = vmatpush1.msra.mxu0 0.0
    %70 = vmatprep.subr.mxu0 0.0
    %71 = vmatpush1.msra.mxu0 0.0
    %72 = vmatprep.subr.mxu0 0.0
    %73 = vmatpush1.msra.mxu0 0.0
    %74 = vmatprep.subr.mxu0 0.0
    %75 = vmatpush1.msra.mxu0 0.0
    %76 = vmatprep.subr.mxu0 0.0
    %77 = vmatpush1.msra.mxu0 0.0
    %78 = vmatprep.subr.mxu0 0.0
    %79 = vmatpush1.msra.mxu0 0.0
    %80 = vmatprep.subr.mxu0 0.0
    %81 = vmatpush1.msra.mxu0 0.0
    %82 = vmatprep.subr.mxu0 0.0
    %83 = vmatpush1.msra.mxu0 0.0
    %84 = vmatprep.subr.mxu0 0.0
    %85 = vmatpush1.msra.mxu0 0.0
    %86 = vmatprep.subr.mxu0 0.0
    %87 = vmatpush1.msra.mxu0 0.0
    %88 = vmatprep.subr.mxu0 0.0
    %89 = vmatpush1.msra.mxu0 0.0
    %90 = vmatprep.subr.mxu0 0.0
    %91 = vmatpush1.msra.mxu0 0.0
    %92 = vmatprep.subr.mxu0 0.0
    %93 = vmatpush1.msra.mxu0 0.0
    %94 = vmatprep.subr.mxu0 0.0
    %95 = vmatpush1.msra.mxu0 0.0
    %96 = vmatprep.subr.mxu0 0.0
    %97 = vmatpush1.msra.mxu0 0.0
    %98 = vmatprep.subr.mxu0 0.0
    %99 = vmatpush1.msra.mxu0 0.0
    %100 = vmatprep.subr.mxu0 0.0
    %101 = vmatpush1.msra.mxu0 0.0
    %102 = vmatprep.subr.mxu0 0.0
    %103 = vmatpush1.msra.mxu0 0.0
    %104 = vmatprep.subr.mxu0 0.0
    %105 = vmatpush1.msra.mxu0 0.0
    %106 = vmatprep.subr.mxu0 0.0
    %107 = vmatpush1.msra.mxu0 0.0
    %108 = vmatprep.subr.mxu0 0.0
    %109 = vmatpush1.msra.mxu0 0.0
    %110 = vmatprep.subr.mxu0 0.0
    %111 = vmatpush1.msra.mxu0 0.0
    %112 = vmatprep.subr.mxu0 0.0
    %113 = vmatpush1.msra.mxu0 0.0
    %114 = vmatprep.mubr.f32.mxu0 0.0
    %115 = vmatmul.mubr.f32.gmra.mrb[0].mxu0 %v41
    %v116 = vpop.f32.mrb[0].mxu0
    %v117 = vadd.f32 %v32, %v116
    %v118 = vpop.f32.mrb[0].mxu0
    %119 = vmatprep.mubr.f32.mxu0 0.0
    %120 = vmatmul.mubr.f32.gmra.mrb[0].mxu0 %v44
    %v121 = vpop.f32.mrb[0].mxu0
    %v122 = vadd.f32 %v37, %v121
    %v123 = vpop.f32.mrb[0].mxu0
    %124 = vdwg.mxu0
    %v125 = vmax.f32 %v117, 0.0
    %v126 = vmax.f32 %v122, 0.0
    %v127 = vstv %s27
    %vm128 = vcmask 80896
    %v130 = vsel %vm128, %v26, 0
    %vm132 = vcmask 1041408
    %v134 = vsel %vm132, %v126, 0
    %136 = vmatprep.subr.mxu0 0.0
    %137 = vmatpush1.msra.mxu0 %v125
    %138 = vmatprep.subr.mxu0 0.0
    %139 = vmatpush1.msra.mxu0 %v134
    %140 = vmatprep.subr.mxu0 0.0
    %141 = vmatpush1.msra.mxu0 0.0
    %142 = vmatprep.subr.mxu0 0.0
    %143 = vmatpush1.msra.mxu0 0.0
    %144 = vmatprep.subr.mxu0 0.0
    %145 = vmatpush1.msra.mxu0 0.0
    %146 = vmatprep.subr.mxu0 0.0
    %147 = vmatpush1.msra.mxu0 0.0
    %148 = vmatprep.subr.mxu0 0.0
    %149 = vmatpush1.msra.mxu0 0.0
    %150 = vmatprep.subr.mxu0 0.0
    %151 = vmatpush1.msra.mxu0 0.0
    %152 = vmatprep.subr.mxu0 0.0
    %153 = vmatpush1.msra.mxu0 0.0
    %154 = vmatprep.subr.mxu0 0.0
    %155 = vmatpush1.msra.mxu0 0.0
    %156 = vmatprep.subr.mxu0 0.0
    %157 = vmatpush1.msra.mxu0 0.0
    %158 = vmatprep.subr.mxu0 0.0
    %159 = vmatpush1.msra.mxu0 0.0
    %160 = vmatprep.subr.mxu0 0.0
    %161 = vmatpush1.msra.mxu0 0.0
    %162 = vmatprep.subr.mxu0 0.0
    %163 = vmatpush1.msra.mxu0 0.0
    %164 = vmatprep.subr.mxu0 0.0
    %165 = vmatpush1.msra.mxu0 0.0
    %166 = vmatprep.subr.mxu0 0.0
    %167 = vmatpush1.msra.mxu0 0.0
    %168 = vmatprep.subr.mxu0 0.0
    %169 = vmatpush1.msra.mxu0 0.0
    %170 = vmatprep.subr.mxu0 0.0
    %171 = vmatpush1.msra.mxu0 0.0
    %172 = vmatprep.subr.mxu0 0.0
    %173 = vmatpush1.msra.mxu0 0.0
    %174 = vmatprep.subr.mxu0 0.0
    %175 = vmatpush1.msra.mxu0 0.0
    %176 = vmatprep.subr.mxu0 0.0
    %177 = vmatpush1.msra.mxu0 0.0
    %178 = vmatprep.subr.mxu0 0.0
    %179 = vmatpush1.msra.mxu0 0.0
    %180 = vmatprep.subr.mxu0 0.0
    %181 = vmatpush1.msra.mxu0 0.0
    %182 = vmatprep.subr.mxu0 0.0
    %183 = vmatpush1.msra.mxu0 0.0
    %184 = vmatprep.subr.mxu0 0.0
    %185 = vmatpush1.msra.mxu0 0.0
    %186 = vmatprep.subr.mxu0 0.0
    %187 = vmatpush1.msra.mxu0 0.0
    %188 = vmatprep.subr.mxu0 0.0
    %189 = vmatpush1.msra.mxu0 0.0
    %190 = vmatprep.subr.mxu0 0.0
    %191 = vmatpush1.msra.mxu0 0.0
    %192 = vmatprep.subr.mxu0 0.0
    %193 = vmatpush1.msra.mxu0 0.0
    %194 = vmatprep.subr.mxu0 0.0
    %195 = vmatpush1.msra.mxu0 0.0
    %196 = vmatprep.subr.mxu0 0.0
    %197 = vmatpush1.msra.mxu0 0.0
    %198 = vmatprep.subr.mxu0 0.0
    %199 = vmatpush1.msra.mxu0 0.0
    %200 = vmatprep.mubr.f32.mxu0 0.0
    %201 = vmatmul.mubr.f32.gmra.mrb[0].mxu0 %v130
    %v202 = vpop.f32.mrb[0].mxu0
    %v203 = vadd.f32 %v127, %v202
    %v204 = vpop.f32.mrb[0].mxu0
    %205 = vdwg.mxu0
    %v206 = vxor.u32 %v203, 2147483648
    %v207 = vmul.f32 %v206, 1.442695
    %v208 = vpow.pop %v207
    %v209 = vadd.f32 %v208, 1.0
    %v210 = vrcp.pop %v209
    %v211 = vmul.f32 1.0, %v210
    %212 = vst [vmem:[#allocation3] sm:$0x1] %v211
    // Predicated region
    $region22: #{tpu_custom_call.1} parent=1 // pred_check
      _
    $region23: #{tpu_custom_call.1} parent=1 // pred_check_branch
      %214 = sbr.rel (0) target = $region25
    $region24: #{tpu_custom_call.1} parent=1 // pred_region
      %s216 = ssub.s32 16, 16
      %217 = vsyncadd [#allocation4], %s216
      %s219 = sshll.u32 [#allocation3], 4
      %s220 = int_to_ptr.vmem [resolvable:$true] %s219
      %222 = dma.vmem_to_hbm [thread:$0]  %s220, 16, %s5, [#allocation4]
    $region25: #{tpu_custom_call.1} parent=1 // pred_fallthru
      _
    // Predicated region
    $region26: #{tpu_custom_call.1} parent=1 // pred_check
      _
    $region27: #{tpu_custom_call.1} parent=1 // pred_check_branch
      %224 = sbr.rel (0) target = $region29
    $region28: #{tpu_custom_call.1} parent=1 // pred_region
      %225 = dma.done [#allocation4], 16
    $region29: #{tpu_custom_call.1} parent=1 // pred_fallthru
      _
    %226 = vsyncpa [#allocation4], 1

</llo_original>
